<compile_context>
chip_gen: v5e
topology: v5e:2x2
jax: 0.10.0
libtpu: 0.0.40
codegen_flags: <defaults>
</compile_context>

<pallas_src>
import jax
import jax.numpy as jnp
from jax.experimental import pallas as pl
from jax.experimental.pallas import tpu as pltpu


def _build_avg_matrix(seq_len, kernel_size, dtype=jnp.float32):
    """(L, L) matrix A with A @ x == replicate-padded K-tap moving average."""
    pad = (kernel_size - 1) // 2
    m = jnp.arange(seq_len)[:, None]                     # (L, 1) output index
    k = jnp.arange(kernel_size)[None, :]                 # (1, K) window tap
    # Padded position m+k maps to original index clamp(m + k - pad, 0, L-1)
    # (replicate padding folded into the first/last columns).
    src = jnp.clip(m + k - pad, 0, seq_len - 1)          # (L, K)
    onehot = jax.nn.one_hot(src, seq_len, dtype=dtype)   # (L, K, L)
    return onehot.sum(axis=1) * (1.0 / kernel_size)      # (L, L)


def _decomp_kernel(a_ref, x_ref, res_ref, trend_ref):
    # a_ref: (L, L) f32 averaging matrix (grid-invariant)
    # x_ref: (L, TN) lane-dense tile of x reshaped to (L, B*C)
    x = x_ref[...].astype(jnp.float32)                   # (L, TN)
    trend = jnp.dot(a_ref[...], x,
                    preferred_element_type=jnp.float32)  # (L, TN) moving mean
    res = x - trend                                      # seasonal residual
    trend_ref[...] = trend.astype(trend_ref.dtype)
    res_ref[...] = res.astype(res_ref.dtype)


def series_decomposition(x, kernel_size=25):
    """x: (B, seq_len, enc_in) -> (res, moving_mean), each (B, seq_len, enc_in)."""
    B, L, C = x.shape
    N = B * C
    itemsize = jnp.dtype(x.dtype).itemsize

    # Lane-tile width: 128-aligned; go wider when there is enough work.
    TN = 512 if N >= 512 else 128
    n_tiles = pl.cdiv(N, TN)
    Npad = n_tiles * TN

    # Precomputed averaging matrix (padding + 25-tap mean folded in).
    A = _build_avg_matrix(L, kernel_size, jnp.float32)

    # Lane-dense slab: time on sublanes, batch*channels on lanes.
    x2 = jnp.transpose(x, (1, 0, 2)).reshape(L, N)
    if Npad != N:
        x2 = jnp.pad(x2, ((0, 0), (0, Npad - N)))

    res2, trend2 = pl.pallas_call(
        _decomp_kernel,
        out_shape=(jax.ShapeDtypeStruct((L, Npad), x.dtype),
                   jax.ShapeDtypeStruct((L, Npad), x.dtype)),
        grid_spec=pltpu.PrefetchScalarGridSpec(
            num_scalar_prefetch=0,
            grid=(n_tiles,),
            in_specs=[
                pl.BlockSpec((L, L), lambda n: (0, 0)),    # A (resident)
                pl.BlockSpec((L, TN), lambda n: (0, n)),   # x tile
            ],
            out_specs=[
                pl.BlockSpec((L, TN), lambda n: (0, n)),   # res tile
                pl.BlockSpec((L, TN), lambda n: (0, n)),   # trend tile
            ],
        ),
        compiler_params=pltpu.CompilerParams(
            dimension_semantics=("parallel",)),
        cost_estimate=pl.CostEstimate(
            flops=2 * L * L * Npad,
            transcendentals=0,
            bytes_accessed=3 * L * Npad * itemsize + L * L * 4),
    )(A, x2)

    # Back to (B, L, C).
    res = res2[:, :N].reshape(L, B, C).transpose(1, 0, 2)
    trend = trend2[:, :N].reshape(L, B, C).transpose(1, 0, 2)
    return res, trend


def _reference(x, kernel_size):
    """Pure-JAX reference mirroring the PyTorch SeriesDecomposition forward."""
    pad = (kernel_size - 1) // 2
    front = jnp.repeat(x[:, 0:1, :], pad, axis=1)
    end = jnp.repeat(x[:, -1:, :], pad, axis=1)
    xp = jnp.concatenate([front, x, end], axis=1)        # (B, L + 2*pad, C)
    L = x.shape[1]
    windows = jnp.stack([xp[:, k:k + L, :] for k in range(kernel_size)], 0)
    trend = windows.mean(axis=0)                         # (B, L, C)
    res = x - trend
    return res, trend


if __name__ == "__main__":
    B, seq_len, enc_in, kernel_size = 2, 32, 8, 25

    key = jax.random.PRNGKey(0)
    x = jax.random.normal(key, (B, seq_len, enc_in), dtype=jnp.float32)

    res, trend = series_decomposition(x, kernel_size=kernel_size)
    res, trend = jax.block_until_ready((res, trend))

    res_ref, trend_ref = _reference(x, kernel_size)

    assert res.shape == (B, seq_len, enc_in)
    assert trend.shape == (B, seq_len, enc_in)
    assert jnp.allclose(trend, trend_ref, atol=1e-4, rtol=1e-4)
    assert jnp.allclose(res, res_ref, atol=1e-4, rtol=1e-4)

    print("KERNEL_OK")
</pallas_src>

<mosaic_0001>
module attributes {stable_mosaic.version = 11 : i64} {
  func.func @_decomp_kernel(%arg0: i32, %arg1: memref<32x32xf32, #tpu.memory_space<vmem>>, %arg2: memref<32x128xf32, #tpu.memory_space<vmem>>, %arg3: memref<32x128xf32, #tpu.memory_space<vmem>>, %arg4: memref<32x128xf32, #tpu.memory_space<vmem>>) attributes {dimension_semantics = [#tpu.dimension_semantics<parallel>], iteration_bounds = array<i64: 1>, scalar_prefetch = 0 : i64, scratch_operands = 0 : i64, tpu.core_type = #tpu.core_type<tc>, window_params = [{pipeline_mode = #tpu.pipeline_mode<synchronous>, transform_indices = @transform_0, window_bounds = array<i64: 32, 32>}, {transform_indices = @transform_1, window_bounds = array<i64: 32, 128>}, {transform_indices = @transform_2, window_bounds = array<i64: 32, 128>}, {transform_indices = @transform_3, window_bounds = array<i64: 32, 128>}]} {
    %c0 = arith.constant 0 : index
    %c0_0 = arith.constant 0 : index
    %0 = vector.load %arg2[%c0, %c0_0] : memref<32x128xf32, #tpu.memory_space<vmem>>, vector<32x128xf32>
    %c0_1 = arith.constant 0 : index
    %c0_2 = arith.constant 0 : index
    %1 = vector.load %arg1[%c0_1, %c0_2] : memref<32x32xf32, #tpu.memory_space<vmem>>, vector<32x32xf32>
    %cst = arith.constant dense<0.000000e+00> : vector<32x128xf32>
    %2 = tpu.matmul %1, %0, %cst {dimension_numbers = #tpu.dot_dimension_numbers<[1], [0], [0], [1], [0, 0, 1, 1], [], []>} : vector<32x32xf32>, vector<32x128xf32>, vector<32x128xf32> -> vector<32x128xf32>
    %3 = arith.subf %0, %2 : vector<32x128xf32>
    %c0_3 = arith.constant 0 : index
    %c0_4 = arith.constant 0 : index
    %4 = vector.load %arg4[%c0_3, %c0_4] : memref<32x128xf32, #tpu.memory_space<vmem>>, vector<32x128xf32>
    tpu.vector_store %arg4[%c0_3, %c0_4], %2 {strides = array<i32>} : memref<32x128xf32, #tpu.memory_space<vmem>>, vector<32x128xf32>,
    %c0_5 = arith.constant 0 : index
    %c0_6 = arith.constant 0 : index
    %5 = vector.load %arg3[%c0_5, %c0_6] : memref<32x128xf32, #tpu.memory_space<vmem>>, vector<32x128xf32>
    tpu.vector_store %arg3[%c0_5, %c0_6], %3 {strides = array<i32>} : memref<32x128xf32, #tpu.memory_space<vmem>>, vector<32x128xf32>,
    return
  }
  func.func @transform_0(%arg0: i32) -> (i32, i32) {
    %c0_i32 = arith.constant 0 : i32
    %c0_i32_0 = arith.constant 0 : i32
    %c0_i32_1 = arith.constant 0 : i32
    return %c0_i32, %c0_i32_0 : i32, i32
  }
  func.func @transform_1(%arg0: i32) -> (i32, i32) {
    %c0_i32 = arith.constant 0 : i32
    %c0_i32_0 = arith.constant 0 : i32
    return %c0_i32, %arg0 : i32, i32
  }
  func.func @transform_2(%arg0: i32) -> (i32, i32) {
    %c0_i32 = arith.constant 0 : i32
    %c0_i32_0 = arith.constant 0 : i32
    return %c0_i32, %arg0 : i32, i32
  }
  func.func @transform_3(%arg0: i32) -> (i32, i32) {
    %c0_i32 = arith.constant 0 : i32
    %c0_i32_0 = arith.constant 0 : i32
    return %c0_i32, %arg0 : i32, i32
  }
}

</mosaic_0001>

<llo_original>
// kernel: tpu_custom_call.1
$region0: #{tpu_custom_call.1}
  #allocation0 [shape = 'u32[]', space=smem, size = 0x4, offset = 0x4, fixed_abs, tag = 'smem constant byte address 0x4 - core index']
  #allocation1 [shape = 'u32[72,128]{1,0:T(1,128)}', space=vmem, size = 0x9000, scoped, tag = 'internal scratch']
  %s0 = inlined_call_operand.hbm [shape: f32[32,32], index: 0, kind: input, shape index: {}]
  %s1 = inlined_call_operand.hbm [shape: f32[32,128], index: 1, kind: input, shape index: {}]
  %s2 = inlined_call_operand.hbm [shape: f32[32,128], index: 2, kind: output, shape index: {0}]
  %s3 = inlined_call_operand.hbm [shape: f32[32,128], index: 3, kind: output, shape index: {1}]
  %4 = xla_tuple %s2, %s3
  %s5 = sld [smem:[#allocation0]]
  $region34: #{tpu_custom_call.1} parent=0
    _
  %s7 = ssub.s32 1, %s5
  %s8 = scalar_select 0, %s7, %s5
  $region1: #{tpu_custom_call.1} parent=0
    #allocation2 [shape = 'u8[16384]{0}', space=vmem, size = 0x4000, scoped, tag = 'input window, operand 0, single buffered']
    #allocation3 [shape = 's32[1]{0}', space=sflag, size = 0x4, scoped, tag = 'scoped memory for tpu_custom_call.1']
    #allocation4 [shape = 's32[1]{0}', space=sflag, size = 0x4, scoped, tag = 'scoped memory for tpu_custom_call.1']
    #allocation5 [shape = 'u8[16384]{0}', space=vmem, size = 0x4000, scoped, tag = 'input window, operand 1, single buffered']
    #allocation6 [shape = 's32[1]{0}', space=sflag, size = 0x4, scoped, tag = 'scoped memory for tpu_custom_call.1']
    #allocation7 [shape = 'u8[16384]{0}', space=vmem, size = 0x4000, scoped, tag = 'output window, operand 0, single buffered']
    #allocation8 [shape = 'u8[16384]{0}', space=vmem, size = 0x4000, scoped, tag = 'output window, operand 1, single buffered']
    #allocation9 [shape = 's32[1]{0}', space=sflag, size = 0x4, scoped, tag = 'scoped memory for tpu_custom_call.1']
    %9 = vsyncpa [#allocation3], 0
    %10 = vsyncpa [#allocation6], 0
    %11 = vsyncpa [#allocation4], 0
    %12 = vsyncpa [#allocation9], 0
    // Predicated region
    $region2: #{tpu_custom_call.1} parent=1 // pred_check
      _
    $region3: #{tpu_custom_call.1} parent=1 // pred_check_branch
      %14 = sbr.rel (0) target = $region5
    $region4: #{tpu_custom_call.1} parent=1 // pred_region
      %16 = vsyncadd [#allocation3], 0
      %s17 = sshll.u32 %s0, 4
      %s18 = int_to_ptr.hbm [resolvable:$true] %s17
      %s19 = sshll.u32 [#allocation2], 4
      %s20 = int_to_ptr.vmem [resolvable:$true] %s19
      %25 = dma.hbm_to_vmem [thread:$0]  %s18, 512, %s20, [#allocation3], 128, 128, 8
    $region5: #{tpu_custom_call.1} parent=1 // pred_fallthru
      _
    // Predicated region
    $region6: #{tpu_custom_call.1} parent=1 // pred_check
      _
    $region7: #{tpu_custom_call.1} parent=1 // pred_check_branch
      %27 = sbr.rel (0) target = $region9
    $region8: #{tpu_custom_call.1} parent=1 // pred_region
      %29 = vsyncadd [#allocation6], 0
      %s30 = sshll.u32 %s1, 4
      %s31 = int_to_ptr.hbm [resolvable:$true] %s30
      %s32 = sshll.u32 [#allocation5], 4
      %s33 = int_to_ptr.vmem [resolvable:$true] %s32
      %38 = dma.hbm_to_vmem [thread:$0]  %s31, 512, %s33, [#allocation6], 128, 128, 8
    $region9: #{tpu_custom_call.1} parent=1 // pred_fallthru
      _
    // Predicated region
    $region10: #{tpu_custom_call.1} parent=1 // pred_check
      _
    $region11: #{tpu_custom_call.1} parent=1 // pred_check_branch
      %40 = sbr.rel (0) target = $region13
    $region12: #{tpu_custom_call.1} parent=1 // pred_region
      %42 = dma.done [#allocation3], 512
    $region13: #{tpu_custom_call.1} parent=1 // pred_fallthru
      _
    // Predicated region
    $region14: #{tpu_custom_call.1} parent=1 // pred_check
      _
    $region15: #{tpu_custom_call.1} parent=1 // pred_check_branch
      %44 = sbr.rel (0) target = $region17
    $region16: #{tpu_custom_call.1} parent=1 // pred_region
      %46 = dma.done [#allocation6], 512
    $region17: #{tpu_custom_call.1} parent=1 // pred_fallthru
      _
    %v47 = vld [vmem:[#allocation5] sm:$0xff]
    %v48 = vld [vmem:[#allocation5 + $0x8] sm:$0xff]
    %v49 = vld [vmem:[#allocation5 + $0x10] sm:$0xff]
    %v50 = vld [vmem:[#allocation5 + $0x18] sm:$0xff]
    %v51 = vld [vmem:[#allocation2] sm:$0xff]
    %v52 = vld [vmem:[#allocation2 + $0x8] sm:$0xff]
    %v53 = vld [vmem:[#allocation2 + $0x10] sm:$0xff]
    %v54 = vld [vmem:[#allocation2 + $0x18] sm:$0xff]
    %vm55 = vcmask 261120
    %v57 = vsel %vm55, %v51, 0
    %v60 = vsel %vm55, %v52, 0
    %v63 = vsel %vm55, %v53, 0
    %v66 = vsel %vm55, %v54, 0
    %68 = vmatpush.msra.mxu0 0.0
    %69 = vmatpush.msra.mxu0 0.0
    %70 = vmatpush.msra.mxu0 0.0
    %71 = vmatpush.msra.mxu0 0.0
    %72 = vmatpush.msra.mxu0 0.0
    %73 = vmatpush.msra.mxu0 0.0
    %74 = vmatpush.msra.mxu0 0.0
    %75 = vmatpush.msra.mxu0 0.0
    %76 = vmatpush.msra.mxu0 0.0
    %77 = vmatpush.msra.mxu0 0.0
    %78 = vmatpush.msra.mxu0 0.0
    %79 = vmatpush.msra.mxu0 0.0
    %80 = vmatpush.msra.mxu0 %v50
    %81 = vmatpush.msra.mxu0 %v49
    %82 = vmatpush.msra.mxu0 %v48
    %83 = vmatpush.msra.mxu0 %v47
    %84 = vmatmul.f32.gmra.mxu0 %v57
    %v85 = vpop.f32.mrf.mxu0
    %v86 = vadd.f32 0.0, %v85
    %87 = vmatmul.f32.gmra.mxu0 %v60
    %v88 = vpop.f32.mrf.mxu0
    %v89 = vadd.f32 0.0, %v88
    %90 = vmatmul.f32.gmra.mxu0 %v63
    %v91 = vpop.f32.mrf.mxu0
    %v92 = vadd.f32 0.0, %v91
    %93 = vmatmul.f32.gmra.mxu0 %v66
    %v94 = vpop.f32.mrf.mxu0
    %v95 = vadd.f32 0.0, %v94
    %96 = vdwg.mxu0
    %v97 = vsub.f32 %v47, %v86
    %v98 = vsub.f32 %v48, %v89
    %v99 = vsub.f32 %v49, %v92
    %v100 = vsub.f32 %v50, %v95
    %101 = vst [vmem:[#allocation8] sm:$0xff] %v86
    %102 = vst [vmem:[#allocation8 + $0x8] sm:$0xff] %v89
    %103 = vst [vmem:[#allocation8 + $0x10] sm:$0xff] %v92
    %104 = vst [vmem:[#allocation8 + $0x18] sm:$0xff] %v95
    %105 = vst [vmem:[#allocation7] sm:$0xff] %v97
    %106 = vst [vmem:[#allocation7 + $0x8] sm:$0xff] %v98
    %107 = vst [vmem:[#allocation7 + $0x10] sm:$0xff] %v99
    %108 = vst [vmem:[#allocation7 + $0x18] sm:$0xff] %v100
    // Predicated region
    $region18: #{tpu_custom_call.1} parent=1 // pred_check
      _
    $region19: #{tpu_custom_call.1} parent=1 // pred_check_branch
      %110 = sbr.rel (0) target = $region21
    $region20: #{tpu_custom_call.1} parent=1 // pred_region
      %112 = vsyncadd [#allocation4], 0
      %s113 = sshll.u32 [#allocation7], 4
      %s114 = int_to_ptr.vmem [resolvable:$true] %s113
      %s115 = sshll.u32 %s2, 4
      %s116 = int_to_ptr.hbm [resolvable:$true] %s115
      %121 = dma.vmem_to_hbm [thread:$0]  %s114, 512, %s116, [#allocation4], 128, 128, 8
    $region21: #{tpu_custom_call.1} parent=1 // pred_fallthru
      _
    // Predicated region
    $region22: #{tpu_custom_call.1} parent=1 // pred_check
      _
    $region23: #{tpu_custom_call.1} parent=1 // pred_check_branch
      %123 = sbr.rel (0) target = $region25
    $region24: #{tpu_custom_call.1} parent=1 // pred_region
      %125 = vsyncadd [#allocation9], 0
      %s126 = sshll.u32 [#allocation8], 4
      %s127 = int_to_ptr.vmem [resolvable:$true] %s126
      %s128 = sshll.u32 %s3, 4
      %s129 = int_to_ptr.hbm [resolvable:$true] %s128
      %134 = dma.vmem_to_hbm [thread:$0]  %s127, 512, %s129, [#allocation9], 128, 128, 8
    $region25: #{tpu_custom_call.1} parent=1 // pred_fallthru
      _
    // Predicated region
    $region26: #{tpu_custom_call.1} parent=1 // pred_check
      _
    $region27: #{tpu_custom_call.1} parent=1 // pred_check_branch
      %136 = sbr.rel (0) target = $region29
    $region28: #{tpu_custom_call.1} parent=1 // pred_region
      %138 = dma.done [#allocation4], 512
    $region29: #{tpu_custom_call.1} parent=1 // pred_fallthru
      _
    // Predicated region
    $region30: #{tpu_custom_call.1} parent=1 // pred_check
      _
    $region31: #{tpu_custom_call.1} parent=1 // pred_check_branch
      %140 = sbr.rel (0) target = $region33
    $region32: #{tpu_custom_call.1} parent=1 // pred_region
      %142 = dma.done [#allocation9], 512
    $region33: #{tpu_custom_call.1} parent=1 // pred_fallthru
      _
    %143 = vsyncpa [#allocation3], 1
    %144 = vsyncpa [#allocation6], 1
    %145 = vsyncpa [#allocation4], 1
    %146 = vsyncpa [#allocation9], 1

</llo_original>
